<compile_context>
chip_gen: v7x
topology: tpu7x:2x2x1
jax: 0.10.0
libtpu: 0.0.40
codegen_flags: <defaults>
</compile_context>

<pallas_src>
import jax
import jax.numpy as jnp
from jax.experimental import pallas as pl
from jax.experimental.pallas import tpu as pltpu


_DEFAULT_MAX_TILE_ELEMS = 512 * 1024      # input elements per block (f32: 2 MiB in / 4 MiB out)
_DEFAULT_XLA_FALLBACK_ELEMS = 128 * 1024  # below this, XLA's fused concat wins on latency
_MIN_SPLIT_ELEMS = 64 * 1024              # don't split a lone block smaller than this (v7x 2-TC)


def _add_inverse_kernel(x_ref, o_ref):
    # x_ref block: (tile_b, tile_rows, 128); o_ref block: (tile_b, 2, tile_rows, 128)
    x = x_ref[...]
    o_ref[:, 0, :, :] = x          # dense (tile_b, tile_rows, 128) slab store
    o_ref[:, 1, :, :] = 1 - x      # dense slab store


def add_inverse(x: jax.Array,
                *,
                max_tile_elems: int = _DEFAULT_MAX_TILE_ELEMS,
                xla_fallback_elems: int = _DEFAULT_XLA_FALLBACK_ELEMS) -> jax.Array:
    """Concat [x, 1 - x] along the channel axis (dim=-3), NCHW layout."""
    squeeze_batch = False
    if x.ndim == 3:                       # [C, H, W] -> [1, C, H, W]
        x = x[None]
        squeeze_batch = True
    assert x.ndim == 4, "expected [B, C, H, W] or [C, H, W]"
    B, C, H, W = x.shape
    L = C * H * W

    # XLA fallback: tiny inputs (fixed pallas_call cost dominates) or a
    # flattened per-batch size that is not a multiple of the 128-lane width.
    if L == 0 or (L % 128) != 0 or x.size <= xla_fallback_elems:
        out = jnp.concatenate([x, 1 - x], axis=-3)
        return out[0] if squeeze_batch else out

    R = L // 128                          # sublane rows per batch element
    x_flat = x.reshape(B, R, 128)         # contiguous reshape -> free

    rows_budget = max(8, (max_tile_elems // 128) // 8 * 8)
    if R <= rows_budget:
        # Whole per-batch feature map fits in one block: fold batches in.
        tile_rows = R
        tile_b = min(B, max(1, rows_budget // R))
    else:
        # Tile along the sublane-dense row axis (multiple of 8 rows).
        tile_rows = rows_budget
        tile_b = 1

    n_b_blocks = pl.cdiv(B, tile_b)
    n_row_blocks = pl.cdiv(R, tile_rows)

    # v7x shards "parallel" grid axes across its 2 TensorCores; avoid a (1, 1)
    # grid when there is enough data to make splitting worthwhile.
    if n_b_blocks * n_row_blocks == 1 and B * L >= _MIN_SPLIT_ELEMS:
        if B >= 2:
            tile_b = pl.cdiv(B, 2)
            n_b_blocks = pl.cdiv(B, tile_b)
        elif R >= 16:
            tile_rows = ((pl.cdiv(R, 2) + 7) // 8) * 8
            n_row_blocks = pl.cdiv(R, tile_rows)

    out_flat = pl.pallas_call(
        _add_inverse_kernel,
        out_shape=jax.ShapeDtypeStruct((B, 2, R, 128), x.dtype),
        grid=(n_b_blocks, n_row_blocks),
        in_specs=[pl.BlockSpec((tile_b, tile_rows, 128),
                               lambda b, j: (b, j, 0))],
        out_specs=pl.BlockSpec((tile_b, 2, tile_rows, 128),
                               lambda b, j: (b, 0, j, 0)),
        compiler_params=pltpu.CompilerParams(
            dimension_semantics=("parallel", "parallel"),
            vmem_limit_bytes=32 * 1024 * 1024,
        ),
    )(x_flat)

    out = out_flat.reshape(B, 2 * C, H, W)   # contiguous reshape -> free
    if squeeze_batch:
        out = out[0]
    return out


if __name__ == "__main__":
    key = jax.random.PRNGKey(0)

    # 1) Canonical small batched NCHW input, forced through the Pallas path
    #    (batch-folded block: (2, 8, 128) in, (2, 2, 8, 128) out, grid (1, 1)).
    B, C, H, W = 2, 4, 16, 16
    x = jax.random.uniform(key, (B, C, H, W), dtype=jnp.float32)
    out = add_inverse(x, xla_fallback_elems=0)
    jax.block_until_ready(out)
    ref = jnp.concatenate([x, 1.0 - x], axis=-3)
    assert out.shape == (B, 2 * C, H, W) and out.dtype == x.dtype
    assert jnp.allclose(out, ref), "mismatch vs reference (batched)"

    # 2) Single-image [C, H, W] path.
    x3 = x[0]
    out3 = add_inverse(x3, xla_fallback_elems=0)
    jax.block_until_ready(out3)
    assert jnp.allclose(out3, jnp.concatenate([x3, 1.0 - x3], axis=-3))

    # 3) Row-tiled path with a partial final row block:
    #    L = 8*48*64 = 24576 -> R = 192 rows; tile_rows = 80 -> 3 tiles (80/80/32).
    k2 = jax.random.fold_in(key, 1)
    xb = jax.random.uniform(k2, (1, 8, 48, 64), dtype=jnp.float32)
    outb = add_inverse(xb, xla_fallback_elems=0, max_tile_elems=80 * 128)
    jax.block_until_ready(outb)
    assert jnp.allclose(outb, jnp.concatenate([xb, 1.0 - xb], axis=-3))

    # 4) Default path: tiny / non-128-multiple flattened size -> XLA fallback.
    xs = jax.random.uniform(jax.random.fold_in(key, 2), (2, 3, 5, 7), dtype=jnp.float32)
    outs = add_inverse(xs)
    jax.block_until_ready(outs)
    assert jnp.allclose(outs, jnp.concatenate([xs, 1.0 - xs], axis=-3))

    print("KERNEL_OK")
</pallas_src>

<mosaic_0001>
module attributes {stable_mosaic.version = 11 : i64} {
  func.func @_add_inverse_kernel(%arg0: i32, %arg1: i32, %arg2: memref<2x8x128xf32, #tpu.memory_space<vmem>>, %arg3: memref<2x2x8x128xf32, #tpu.memory_space<vmem>>) attributes {dimension_semantics = [#tpu.dimension_semantics<parallel>, #tpu.dimension_semantics<parallel>], iteration_bounds = array<i64: 1, 1>, scalar_prefetch = 0 : i64, scratch_operands = 0 : i64, tpu.core_type = #tpu.core_type<tc>, window_params = [{transform_indices = @transform_0, window_bounds = array<i64: 2, 8, 128>}, {transform_indices = @transform_1, window_bounds = array<i64: 2, 2, 8, 128>}]} {
    %c0 = arith.constant 0 : index
    %c0_0 = arith.constant 0 : index
    %c0_1 = arith.constant 0 : index
    %0 = vector.load %arg2[%c0, %c0_0, %c0_1] : memref<2x8x128xf32, #tpu.memory_space<vmem>>, vector<2x8x128xf32>
    %c0_2 = arith.constant 0 : index
    %c0_3 = arith.constant 0 : index
    %c0_4 = arith.constant 0 : index
    %c0_5 = arith.constant 0 : index
    %1 = vector.load %arg3[%c0_2, %c0_3, %c0_4, %c0_5] : memref<2x2x8x128xf32, #tpu.memory_space<vmem>>, vector<2x1x8x128xf32>
    %2 = vector.shape_cast %1 : vector<2x1x8x128xf32> to vector<2x8x128xf32>
    %3 = vector.shape_cast %0 : vector<2x8x128xf32> to vector<2x1x8x128xf32>
    tpu.vector_store %arg3[%c0_2, %c0_3, %c0_4, %c0_5], %3 {strides = array<i32>} : memref<2x2x8x128xf32, #tpu.memory_space<vmem>>, vector<2x1x8x128xf32>,
    %cst = arith.constant 1.000000e+00 : f32
    %4 = vector.broadcast %cst : f32 to vector<2x8x128xf32>
    %5 = arith.subf %4, %0 : vector<2x8x128xf32>
    %c0_6 = arith.constant 0 : index
    %c1 = arith.constant 1 : index
    %c0_7 = arith.constant 0 : index
    %c0_8 = arith.constant 0 : index
    %6 = vector.load %arg3[%c0_6, %c1, %c0_7, %c0_8] : memref<2x2x8x128xf32, #tpu.memory_space<vmem>>, vector<2x1x8x128xf32>
    %7 = vector.shape_cast %6 : vector<2x1x8x128xf32> to vector<2x8x128xf32>
    %8 = vector.shape_cast %5 : vector<2x8x128xf32> to vector<2x1x8x128xf32>
    tpu.vector_store %arg3[%c0_6, %c1, %c0_7, %c0_8], %8 {strides = array<i32>} : memref<2x2x8x128xf32, #tpu.memory_space<vmem>>, vector<2x1x8x128xf32>,
    return
  }
  func.func @transform_0(%arg0: i32, %arg1: i32) -> (i32, i32, i32) {
    %c0_i32 = arith.constant 0 : i32
    %c0_i32_0 = arith.constant 0 : i32
    return %arg0, %arg1, %c0_i32 : i32, i32, i32
  }
  func.func @transform_1(%arg0: i32, %arg1: i32) -> (i32, i32, i32, i32) {
    %c0_i32 = arith.constant 0 : i32
    %c0_i32_0 = arith.constant 0 : i32
    %c0_i32_1 = arith.constant 0 : i32
    return %arg0, %c0_i32, %arg1, %c0_i32_0 : i32, i32, i32, i32
  }
}

</mosaic_0001>

<llo_original>
// kernel: tpu_custom_call.1
$region0: #{tpu_custom_call.1}
  #allocation0 [shape = 'u32[]', space=smem, size = 0x4, offset = 0x4, fixed_abs, tag = 'smem constant byte address 0x4 - core index']
  #allocation1 [shape = 'u32[144,128]{1,0:T(1,128)}', space=vmem, size = 0x12000, scoped, tag = 'internal scratch']
  %s0 = inlined_call_operand.hbm [shape: f32[2,8,128], index: 0, kind: input, shape index: {}]
  %s1 = inlined_call_operand.hbm [shape: f32[2,2,8,128], index: 1, kind: output, shape index: {}]
  %s2 = sld [smem:[#allocation0]]
  $region18: #{tpu_custom_call.1} parent=0
    _
  %s4 = ssub.s32 1, %s2
  %s5 = scalar_select 0, %s4, %s2
  $region1: #{tpu_custom_call.1} parent=0
    #allocation2 [shape = 'u8[8192]{0}', space=vmem, size = 0x2000, scoped, tag = 'input window, operand 0, single buffered']
    #allocation3 [shape = 's32[1]{0}', space=sflag, size = 0x4, scoped, tag = 'scoped memory for tpu_custom_call.1']
    #allocation4 [shape = 's32[1]{0}', space=sflag, size = 0x4, scoped, tag = 'scoped memory for tpu_custom_call.1']
    #allocation5 [shape = 'u8[16384]{0}', space=vmem, size = 0x4000, scoped, tag = 'output window, operand 0, single buffered']
    %6 = vsyncpa [#allocation3], 0
    %7 = vsyncpa [#allocation4], 0
    // Predicated region
    $region2: #{tpu_custom_call.1} parent=1 // pred_check
      _
    $region3: #{tpu_custom_call.1} parent=1 // pred_check_branch
      %9 = sbr.rel (0) target = $region5
    $region4: #{tpu_custom_call.1} parent=1 // pred_region
      %s11 = ssub.s32 256, 256
      %12 = vsyncadd [#allocation3], %s11
      %s13 = sshll.u32 [#allocation2], 4
      %s14 = int_to_ptr.vmem [resolvable:$true] %s13
      %19 = dma.hbm_to_vmem [thread:$0]  %s0, 256, %s14, [#allocation3], 128, 128, 8
    $region5: #{tpu_custom_call.1} parent=1 // pred_fallthru
      _
    // Predicated region
    $region6: #{tpu_custom_call.1} parent=1 // pred_check
      _
    $region7: #{tpu_custom_call.1} parent=1 // pred_check_branch
      %21 = sbr.rel (0) target = $region9
    $region8: #{tpu_custom_call.1} parent=1 // pred_region
      %22 = dma.done [#allocation3], 256
    $region9: #{tpu_custom_call.1} parent=1 // pred_fallthru
      _
    %v23 = vld [vmem:[#allocation2] sm:$0xff]
    %v24 = vld [vmem:[#allocation2 + $0x8] sm:$0xff]
    %25 = vst [vmem:[#allocation5] sm:$0xff] %v23
    %26 = vst [vmem:[#allocation5 + $0x10] sm:$0xff] %v24
    %v27 = vsub.f32 1.0, %v23
    %v28 = vsub.f32 1.0, %v24
    %s29 = scalar_lea.vmem [#allocation5], 8
    %30 = vst [vmem:[%s29] sm:$0xff] %v27
    %31 = vst [vmem:[%s29 + $0x10] sm:$0xff] %v28
    // Predicated region
    $region10: #{tpu_custom_call.1} parent=1 // pred_check
      _
    $region11: #{tpu_custom_call.1} parent=1 // pred_check_branch
      %33 = sbr.rel (0) target = $region13
    $region12: #{tpu_custom_call.1} parent=1 // pred_region
      %s35 = ssub.s32 512, 512
      %36 = vsyncadd [#allocation4], %s35
      %s37 = sshll.u32 [#allocation5], 4
      %s38 = int_to_ptr.vmem [resolvable:$true] %s37
      %43 = dma.vmem_to_hbm [thread:$0]  %s38, 512, %s1, [#allocation4], 128, 128, 8
    $region13: #{tpu_custom_call.1} parent=1 // pred_fallthru
      _
    // Predicated region
    $region14: #{tpu_custom_call.1} parent=1 // pred_check
      _
    $region15: #{tpu_custom_call.1} parent=1 // pred_check_branch
      %45 = sbr.rel (0) target = $region17
    $region16: #{tpu_custom_call.1} parent=1 // pred_region
      %46 = dma.done [#allocation4], 512
    $region17: #{tpu_custom_call.1} parent=1 // pred_fallthru
      _
    %47 = vsyncpa [#allocation3], 1
    %48 = vsyncpa [#allocation4], 1

</llo_original>
